<compile_context>
chip_gen: v6e
topology: v6e:2x2x1
jax: 0.10.0
libtpu: 0.0.40
codegen_flags: <defaults>
</compile_context>

<pallas_src>
import functools

import jax
import jax.numpy as jnp
from jax import lax
from jax.experimental import pallas as pl
from jax.experimental.pallas import tpu as pltpu


# -----------------------------------------------------------------------------
# Generation-aware tiling helpers
# -----------------------------------------------------------------------------
def _vmem_plan():
    """Return (max_hw_tile, per-step working-set budget, vmem_limit_bytes|None)."""
    try:
        vmem = pltpu.get_tpu_info().vmem_capacity_bytes
    except Exception:
        vmem = 0
    if vmem >= (100 << 20):
        # v5e / v6e: 128 MiB physical VMEM -> bigger tiles, raise scoped limit.
        return 16384, 48 << 20, 80 << 20
    # v7x (64 MiB physical) or unknown: stay under the 32 MiB scoped default.
    return 8192, 20 << 20, None


def _pick_hw_tile(hw: int, bytes_per_hw: int, max_tile: int, budget: int) -> int:
    """Largest power-of-two multiple of 128 dividing hw whose double-buffered
    per-step working set fits the budget; falls back to the full dim (legal)."""
    t = max_tile
    while t >= 128:
        if hw % t == 0 and t * bytes_per_hw <= budget:
            return t
        t //= 2
    return hw  # odd / small spatial sizes: single full-width tile


def _cparams(sem, vmem_limit=None):
    if vmem_limit is None:
        return pltpu.CompilerParams(dimension_semantics=sem)
    return pltpu.CompilerParams(dimension_semantics=sem,
                                vmem_limit_bytes=vmem_limit)


# -----------------------------------------------------------------------------
# Shared in-kernel helper: ESP hierarchical adds (no channel concat)
# -----------------------------------------------------------------------------
def _group_values(d1_ref, d2_ref, d4_ref, d8_ref, d16_ref):
    """[d1, add1, add2, add3, add4] for one (·, T) tile, upcast to f32.

    The channel concat of the original module is *not* materialized; callers
    consume each group as a sublane slice of the nOut channel axis.
    """
    d1 = d1_ref[0].astype(jnp.float32)
    a1 = d2_ref[0].astype(jnp.float32)          # add1 = d2
    a2 = a1 + d4_ref[0].astype(jnp.float32)     # add2 = add1 + d4
    a3 = a2 + d8_ref[0].astype(jnp.float32)     # add3 = add2 + d8
    a4 = a3 + d16_ref[0].astype(jnp.float32)    # add4 = add3 + d16
    return [d1, a1, a2, a3, a4]


# -----------------------------------------------------------------------------
# Pallas kernel 1: 1x1 "reduce" convolution as a per-sample, per-HW-tile matmul
# -----------------------------------------------------------------------------
def _conv1x1_kernel(w_ref, x_ref, o_ref):
    # Native-dtype operands straight into the MXU (single-pass bf16 when the
    # I/O dtype is bf16); f32 accumulation via preferred_element_type.
    o_ref[0] = jnp.dot(w_ref[...], x_ref[0],
                       preferred_element_type=jnp.float32).astype(o_ref.dtype)


def _conv1x1(x3, w2d, hw_tile):
    N, c_in, HW = x3.shape
    n = w2d.shape[0]
    return pl.pallas_call(
        _conv1x1_kernel,
        out_shape=jax.ShapeDtypeStruct((N, n, HW), x3.dtype),
        grid_spec=pl.GridSpec(
            grid=(N, HW // hw_tile),
            in_specs=[
                pl.BlockSpec((n, c_in), lambda i, j: (0, 0)),
                pl.BlockSpec((1, c_in, hw_tile), lambda i, j: (i, 0, j)),
            ],
            out_specs=pl.BlockSpec((1, n, hw_tile), lambda i, j: (i, 0, j)),
        ),
        compiler_params=_cparams(("parallel", "parallel")),
    )(w2d, x3)


# -----------------------------------------------------------------------------
# Pallas kernel 2 (phase 1): per-sample, per-channel sum / sum-of-squares
# -----------------------------------------------------------------------------
def _stats_kernel(*refs, add_residual, offsets):
    if add_residual:
        x_ref, d1_ref, d2_ref, d4_ref, d8_ref, d16_ref, stat_ref = refs
    else:
        d1_ref, d2_ref, d4_ref, d8_ref, d16_ref, stat_ref = refs
        x_ref = None

    # Per-sample accumulator block: zero it the first time each sample is
    # visited (grid axis 0 may be split across TensorCores on v7x).
    @pl.when(pl.program_id(1) == 0)
    def _():
        stat_ref[...] = jnp.zeros_like(stat_ref)

    sums, sqs = [], []
    groups = _group_values(d1_ref, d2_ref, d4_ref, d8_ref, d16_ref)
    for v, (c0, c1) in zip(groups, offsets):
        if x_ref is not None:
            v = v + x_ref[0, c0:c1, :].astype(jnp.float32)
        sums.append(jnp.sum(v, axis=1, keepdims=True))
        sqs.append(jnp.sum(v * v, axis=1, keepdims=True))
    # NOTE: E[x^2] - mean^2 in one f32 pass; fine at BN magnitudes (a Welford /
    # shifted accumulation would be safer if |mean| >> std).
    stat_ref[0, :, :] += jnp.concatenate(
        [jnp.concatenate(sums, axis=0), jnp.concatenate(sqs, axis=0)], axis=1)


# -----------------------------------------------------------------------------
# Pallas kernel 3 (phase 2): merge + BN (folded epilogue) + per-channel PReLU
# -----------------------------------------------------------------------------
def _apply_kernel(*refs, add_residual, offsets, inv_count, eps):
    if add_residual:
        (stat_ref, par_ref, x_ref,
         d1_ref, d2_ref, d4_ref, d8_ref, d16_ref, o_ref) = refs
    else:
        stat_ref, par_ref, d1_ref, d2_ref, d4_ref, d8_ref, d16_ref, o_ref = refs
        x_ref = None

    # BN epilogue folded in-kernel: reduce the tiny per-sample stats block and
    # derive scale/shift (a few channels of rsqrt per step is noise).
    tot = jnp.sum(stat_ref[...], axis=0)                       # (C, 2) f32
    mean = tot[:, 0:1] * inv_count                             # (C, 1)
    var = jnp.maximum(tot[:, 1:2] * inv_count - mean * mean, 0.0)
    inv_std = lax.rsqrt(var + eps)
    gamma = par_ref[:, 0:1]
    beta = par_ref[:, 1:2]
    alpha = par_ref[:, 2:3]
    scale = gamma * inv_std                                    # (C, 1)
    shift = beta - mean * scale                                # (C, 1)

    groups = _group_values(d1_ref, d2_ref, d4_ref, d8_ref, d16_ref)
    for v, (c0, c1) in zip(groups, offsets):
        if x_ref is not None:
            v = v + x_ref[0, c0:c1, :].astype(jnp.float32)
        z = v * scale[c0:c1] + shift[c0:c1]
        o_ref[0, c0:c1, :] = jnp.where(z >= 0, z, alpha[c0:c1] * z).astype(o_ref.dtype)


# -----------------------------------------------------------------------------
# Full block forward
# -----------------------------------------------------------------------------
def esp_block_forward(x, w_c1, w_d1, w_d2, w_d4, w_d8, w_d16,
                      gamma, beta, alpha, *, add=True, eps=1e-3, io_dtype=None):
    """DilatedParllelResidualBlockB forward (training-mode BatchNorm statistics).

    io_dtype: dtype used for the Pallas-visible branch tensors / output
    (e.g. jnp.bfloat16 halves HBM traffic of the mem-bound merge/BN/PReLU
    phases); in-kernel accumulation stays f32. Defaults to x.dtype.
    """
    N, n_in, H, W = x.shape
    n = w_c1.shape[0]
    n1 = w_d1.shape[0]
    n_out = n1 + 4 * n
    HW = H * W
    io_dtype = x.dtype if io_dtype is None else jnp.dtype(io_dtype)

    if add and n_in != n_out:
        raise ValueError("residual add requires nIn == nOut")

    # Generation-aware HW tile (shared by all three Pallas phases).
    max_tile, budget, vmem_limit = _vmem_plan()
    itemsize = jnp.dtype(io_dtype).itemsize
    in_ch = n_out + (n_out if add else 0)          # branches (+ residual) per step
    bytes_per_hw = max(in_ch + n_out, n_in + n) * itemsize * 2   # x2 double-buffer
    T = _pick_hw_tile(HW, bytes_per_hw, max_tile, budget)
    grid = (N, HW // T)

    # ---- Reduce: 1x1 conv as a Pallas matmul on the natural (N, C, H*W) view.
    x3 = x.astype(io_dtype).reshape(N, n_in, HW)
    out1 = _conv1x1(x3, w_c1.reshape(n, n_in).astype(io_dtype), T)
    out1_4d = out1.reshape(N, n, H, W)

    # ---- Split / Transform: five dilated 3x3 convolutions.
    # TODO(synk): the 3x3 dilated convolutions (d = 1, 2, 4, 8, 16) run on XLA's
    # conv_general_dilated rather than a Pallas kernel (halo handling for five
    # dilation rates is out of scope here). Default precision per perf review.
    def dconv(w, d):
        return lax.conv_general_dilated(
            out1_4d, w.astype(io_dtype), window_strides=(1, 1),
            padding=((d, d), (d, d)), rhs_dilation=(d, d),
            dimension_numbers=("NCHW", "OIHW", "NCHW"))

    d1 = dconv(w_d1, 1).reshape(N, n1, HW)
    d2 = dconv(w_d2, 2).reshape(N, n, HW)
    d4 = dconv(w_d4, 4).reshape(N, n, HW)
    d8 = dconv(w_d8, 8).reshape(N, n, HW)
    d16 = dconv(w_d16, 16).reshape(N, n, HW)

    # Channel offsets of the five ESP groups in the merged tensor.
    offsets, c0 = [], 0
    for gn in (n1, n, n, n, n):
        offsets.append((c0, c0 + gn))
        c0 += gn
    offsets = tuple(offsets)

    branch_specs = [
        pl.BlockSpec((1, n1, T), lambda i, j: (i, 0, j)),
        pl.BlockSpec((1, n, T), lambda i, j: (i, 0, j)),
        pl.BlockSpec((1, n, T), lambda i, j: (i, 0, j)),
        pl.BlockSpec((1, n, T), lambda i, j: (i, 0, j)),
        pl.BlockSpec((1, n, T), lambda i, j: (i, 0, j)),
    ]
    branch_ops = [d1, d2, d4, d8, d16]
    if add:
        res_specs = [pl.BlockSpec((1, n_out, T), lambda i, j: (i, 0, j))]
        res_ops = [x3]
    else:
        res_specs, res_ops = [], []

    # ---- Phase 1: per-sample per-channel sum / sum-of-squares of merge(x).
    # Axis 0 "parallel" (per-sample accumulator blocks -> both v7x TCs join),
    # HW axis "arbitrary" (resident accumulator).
    ch_stats = pl.pallas_call(
        functools.partial(_stats_kernel, add_residual=add, offsets=offsets),
        out_shape=jax.ShapeDtypeStruct((N, n_out, 2), jnp.float32),
        grid_spec=pl.GridSpec(
            grid=grid,
            in_specs=res_specs + branch_specs,
            out_specs=pl.BlockSpec((1, n_out, 2), lambda i, j: (i, 0, 0)),
        ),
        compiler_params=_cparams(("parallel", "arbitrary"), vmem_limit),
    )(*res_ops, *branch_ops)

    # Per-channel affine + PReLU parameters packed into one tiny (C, 3) input.
    params = jnp.stack([gamma.astype(jnp.float32),
                        beta.astype(jnp.float32),
                        alpha.astype(jnp.float32)], axis=1)

    # ---- Phase 2: merge + BN (epilogue folded in-kernel) + PReLU.
    out3 = pl.pallas_call(
        functools.partial(_apply_kernel, add_residual=add, offsets=offsets,
                          inv_count=1.0 / float(N * HW), eps=float(eps)),
        out_shape=jax.ShapeDtypeStruct((N, n_out, HW), io_dtype),
        grid_spec=pl.GridSpec(
            grid=grid,
            in_specs=[pl.BlockSpec((N, n_out, 2), lambda i, j: (0, 0, 0)),
                      pl.BlockSpec((n_out, 3), lambda i, j: (0, 0))]
                     + res_specs + branch_specs,
            out_specs=pl.BlockSpec((1, n_out, T), lambda i, j: (i, 0, j)),
        ),
        compiler_params=_cparams(("parallel", "parallel"), vmem_limit),
    )(ch_stats, params, *res_ops, *branch_ops)

    return out3.reshape(N, n_out, H, W)


# -----------------------------------------------------------------------------
# Pure-JAX reference (mirrors the PyTorch module, training-mode BatchNorm)
# -----------------------------------------------------------------------------
def reference_forward(x, w_c1, w_d1, w_d2, w_d4, w_d8, w_d16,
                      gamma, beta, alpha, *, add=True, eps=1e-3):
    def conv(inp, w, d):
        p = ((w.shape[2] - 1) // 2) * d
        return lax.conv_general_dilated(
            inp, w, window_strides=(1, 1), padding=((p, p), (p, p)),
            rhs_dilation=(d, d), dimension_numbers=("NCHW", "OIHW", "NCHW"))

    out1 = conv(x, w_c1, 1)
    d1 = conv(out1, w_d1, 1)
    d2 = conv(out1, w_d2, 2)
    d4 = conv(out1, w_d4, 4)
    d8 = conv(out1, w_d8, 8)
    d16 = conv(out1, w_d16, 16)
    add1 = d2
    add2 = add1 + d4
    add3 = add2 + d8
    add4 = add3 + d16
    combine = jnp.concatenate([d1, add1, add2, add3, add4], axis=1)
    if add:
        combine = x + combine
    mean = jnp.mean(combine, axis=(0, 2, 3), keepdims=True)
    var = jnp.mean((combine - mean) ** 2, axis=(0, 2, 3), keepdims=True)
    z = (combine - mean) * lax.rsqrt(var + eps) * gamma[None, :, None, None] \
        + beta[None, :, None, None]
    return jnp.where(z >= 0, z, alpha[None, :, None, None] * z)


# -----------------------------------------------------------------------------
# Self-test
# -----------------------------------------------------------------------------
if __name__ == "__main__":
    key = jax.random.PRNGKey(0)
    ks = jax.random.split(key, 10)

    # DilatedParllelResidualBlockB(nIn=40, nOut=40, add=True):
    #   n = nOut // 5 = 8, n1 = nOut - 4*n = 8  (sublane-aligned branch groups)
    N, n_in, H, W = 2, 40, 16, 16
    n_out = n_in
    n = n_out // 5
    n1 = n_out - 4 * n

    def rnd(k, shape, s):
        return s * jax.random.normal(k, shape, dtype=jnp.float32)

    x = rnd(ks[0], (N, n_in, H, W), 1.0)
    w_c1 = rnd(ks[1], (n, n_in, 1, 1), 0.2)
    w_d1 = rnd(ks[2], (n1, n, 3, 3), 0.2)
    w_d2 = rnd(ks[3], (n, n, 3, 3), 0.2)
    w_d4 = rnd(ks[4], (n, n, 3, 3), 0.2)
    w_d8 = rnd(ks[5], (n, n, 3, 3), 0.2)
    w_d16 = rnd(ks[6], (n, n, 3, 3), 0.2)
    # PyTorch defaults would be gamma=1, beta=0, alpha=0.25; perturb deterministically.
    gamma = 1.0 + 0.1 * jax.random.normal(ks[7], (n_out,), jnp.float32)
    beta = 0.1 * jax.random.normal(ks[8], (n_out,), jnp.float32)
    alpha = 0.25 + 0.05 * jax.random.normal(ks[9], (n_out,), jnp.float32)

    ref = reference_forward(x, w_c1, w_d1, w_d2, w_d4, w_d8, w_d16,
                            gamma, beta, alpha, add=True)

    # ---- f32 I/O path (module-faithful dtype) ----
    out = esp_block_forward(x, w_c1, w_d1, w_d2, w_d4, w_d8, w_d16,
                            gamma, beta, alpha, add=True)
    jax.block_until_ready(out)
    assert out.shape == (N, n_out, H, W)
    # Tolerance covers default-precision MXU/conv differences between the Pallas
    # 1x1-conv matmul and XLA's 1x1 conv in the reference.
    assert jnp.allclose(out, ref, atol=2e-2, rtol=2e-2), (
        "f32 mismatch vs pure-JAX reference: max abs err = "
        f"{jnp.max(jnp.abs(out - ref))}")

    # ---- bf16 branch-I/O path (perf option: halves HBM traffic) ----
    out_bf = esp_block_forward(x, w_c1, w_d1, w_d2, w_d4, w_d8, w_d16,
                               gamma, beta, alpha, add=True,
                               io_dtype=jnp.bfloat16)
    jax.block_until_ready(out_bf)
    out_bf = out_bf.astype(jnp.float32)
    assert out_bf.shape == (N, n_out, H, W)
    assert bool(jnp.all(jnp.isfinite(out_bf)))
    assert jnp.allclose(out_bf, ref, atol=1e-1, rtol=1e-1), (
        "bf16 mismatch vs pure-JAX reference: max abs err = "
        f"{jnp.max(jnp.abs(out_bf - ref))}")

    print("KERNEL_OK")
</pallas_src>

<mosaic_0001>
module attributes {stable_mosaic.version = 11 : i64} {
  func.func @_conv1x1_kernel(%arg0: i32, %arg1: i32, %arg2: memref<8x40xf32, #tpu.memory_space<vmem>>, %arg3: memref<1x40x256xf32, #tpu.memory_space<vmem>>, %arg4: memref<1x8x256xf32, #tpu.memory_space<vmem>>) attributes {dimension_semantics = [#tpu.dimension_semantics<parallel>, #tpu.dimension_semantics<parallel>], iteration_bounds = array<i64: 2, 1>, scalar_prefetch = 0 : i64, scratch_operands = 0 : i64, tpu.core_type = #tpu.core_type<tc>, window_params = [{pipeline_mode = #tpu.pipeline_mode<synchronous>, transform_indices = @transform_0, window_bounds = array<i64: 8, 40>}, {transform_indices = @transform_1, window_bounds = array<i64: 1, 40, 256>}, {transform_indices = @transform_2, window_bounds = array<i64: 1, 8, 256>}]} {
    %c0 = arith.constant 0 : index
    %c0_0 = arith.constant 0 : index
    %0 = vector.load %arg2[%c0, %c0_0] : memref<8x40xf32, #tpu.memory_space<vmem>>, vector<8x40xf32>
    %c0_1 = arith.constant 0 : index
    %c0_2 = arith.constant 0 : index
    %c0_3 = arith.constant 0 : index
    %1 = vector.load %arg3[%c0_1, %c0_2, %c0_3] : memref<1x40x256xf32, #tpu.memory_space<vmem>>, vector<1x40x256xf32>
    %2 = vector.shape_cast %1 : vector<1x40x256xf32> to vector<40x256xf32>
    %cst = arith.constant dense<0.000000e+00> : vector<8x256xf32>
    %3 = tpu.matmul %0, %2, %cst {dimension_numbers = #tpu.dot_dimension_numbers<[1], [0], [0], [1], [0, 0, 1, 1], [], []>} : vector<8x40xf32>, vector<40x256xf32>, vector<8x256xf32> -> vector<8x256xf32>
    %c0_4 = arith.constant 0 : index
    %c0_5 = arith.constant 0 : index
    %c0_6 = arith.constant 0 : index
    %4 = vector.load %arg4[%c0_4, %c0_5, %c0_6] : memref<1x8x256xf32, #tpu.memory_space<vmem>>, vector<1x8x256xf32>
    %5 = vector.shape_cast %4 : vector<1x8x256xf32> to vector<8x256xf32>
    %6 = vector.shape_cast %3 : vector<8x256xf32> to vector<1x8x256xf32>
    tpu.vector_store %arg4[%c0_4, %c0_5, %c0_6], %6 {strides = array<i32>} : memref<1x8x256xf32, #tpu.memory_space<vmem>>, vector<1x8x256xf32>,
    return
  }
  func.func @transform_0(%arg0: i32, %arg1: i32) -> (i32, i32) {
    %c0_i32 = arith.constant 0 : i32
    %c0_i32_0 = arith.constant 0 : i32
    %c0_i32_1 = arith.constant 0 : i32
    return %c0_i32, %c0_i32_0 : i32, i32
  }
  func.func @transform_1(%arg0: i32, %arg1: i32) -> (i32, i32, i32) {
    %c0_i32 = arith.constant 0 : i32
    %c0_i32_0 = arith.constant 0 : i32
    return %arg0, %c0_i32, %arg1 : i32, i32, i32
  }
  func.func @transform_2(%arg0: i32, %arg1: i32) -> (i32, i32, i32) {
    %c0_i32 = arith.constant 0 : i32
    %c0_i32_0 = arith.constant 0 : i32
    return %arg0, %c0_i32, %arg1 : i32, i32, i32
  }
}

</mosaic_0001>

<llo_original>
// kernel: tpu_custom_call.1
$region0: #{tpu_custom_call.1}
  #allocation0 [shape = 'u32[]', space=smem, size = 0x4, offset = 0x4, fixed_abs, tag = 'smem constant byte address 0x4 - core index']
  #allocation1 [shape = 'u32[144,128]{1,0:T(1,128)}', space=vmem, size = 0x12000, scoped, tag = 'internal scratch']
  %s0 = inlined_call_operand.hbm [shape: f32[8,40], index: 0, kind: input, shape index: {}]
  %s1 = inlined_call_operand.hbm [shape: f32[2,40,256], index: 1, kind: input, shape index: {}]
  %s2 = inlined_call_operand.hbm [shape: f32[2,8,256], index: 2, kind: output, shape index: {}]
  %s3 = sld [smem:[#allocation0]]
  $region49: #{tpu_custom_call.1} parent=0
    _
  %s5 = ssub.s32 1, %s3
  %s6 = scalar_select 0, %s5, %s3
  $region1: #{tpu_custom_call.1} parent=0
    #allocation2 [shape = 'u8[4096]{0}', space=vmem, size = 0x1000, scoped, tag = 'input window, operand 0, single buffered']
    #allocation3 [shape = 's32[2]{0}', space=sflag, size = 0x8, scoped, tag = 'scoped memory for tpu_custom_call.1']
    #allocation4 [shape = 's32[2]{0}', space=sflag, size = 0x8, scoped, tag = 'scoped memory for tpu_custom_call.1']
    #allocation5 [shape = 'u8[81920]{0}', space=vmem, size = 0x14000, scoped, tag = 'input window, operand 1']
    #allocation6 [shape = 's32[2]{0}', space=sflag, size = 0x8, scoped, tag = 'scoped memory for tpu_custom_call.1']
    #allocation7 [shape = 'u8[16384]{0}', space=vmem, size = 0x4000, scoped, tag = 'output window, operand 0']
    %7 = vsyncpa [#allocation3], 0
    %8 = vsyncpa [#allocation6], 0
    %s9 = scalar_lea.sflag [#allocation6], 1
    %10 = vsyncpa %s9, 0
    %11 = vsyncpa [#allocation4], 0
    %s12 = scalar_lea.sflag [#allocation4], 1
    %13 = vsyncpa %s12, 0
    loop: start=0, step=1, limit=4
    $region2: #{tpu_custom_call.1} parent=1 // loop_pre_header
      _
    $region3: #{tpu_custom_call.1} parent=1 // loop_header
      %s15 = sphi 0, %s19
      %p16 = scmp.ge.s32.totalorder %s15, 4
      %s22 = sphi 0, %s34
      %s23 = sphi 0, %s30
      %s24 = sphi 0, %s22
      %s25 = sphi 0, %s23
      %s26 = sphi 0, %s24
      %s27 = sphi 0, %s25
      %s35 = sphi 0, %s35
      %s37 = sphi 0, %s35
      %s38 = sphi 0, %s37
      %s52 = sphi 0, %s38
      %s60 = sphi 0, %s62
      %s63 = sphi 0, %s60
      %s64 = sphi 0, %s63
      %s80 = sphi 0, %s64
      %s88 = sphi 0, %s90
      %s91 = sphi 0, %s88
      %s92 = sphi 0, %s91
      %s108 = sphi 0, %s92
    $region4: #{tpu_custom_call.1} parent=1 // loop_header_branch
      %18 = sbr.rel (%p16) target = $region8
    $region5: #{tpu_custom_call.1} parent=1 // loop_body
      %s20 = ssub.s32 %s15, 1
      %s21 = ssub.s32 %s15, 2
      %s28 = sadd.s32 1, %s23
      %p29 = scmp.ge.s32.totalorder %s28, 1
      %s30 = scalar_select %p29, 0, %s28
      %s31 = sadd.s32 1, %s22
      %s32 = scalar_select %p29, %s31, %s22
      %p33 = scmp.ge.s32.totalorder %s32, 2
      %s34 = scalar_select %p33, 0, %s32
      %s36 = sadd.s32 %s35, 1
      %p39 = scmp.eq.s32.totalorder %s15, 1
      %p40 = scmp.ne.s32.totalorder %s35, %s37
      %p41 = scmp.eq.s32.totalorder %s15, 0
      %p42 = por %p40, %p41
      %p43 = scmp.ne.s32.totalorder %s35, %s37
      %p44 = scmp.eq.s32.totalorder %s20, 1
      %p45 = por %p43, %p44
      %p46 = scmp.ne.s32.totalorder %s37, %s38
      %p47 = scmp.eq.s32.totalorder %s20, 0
      %p48 = por %p46, %p47
      %p49 = scmp.ne.s32.totalorder %s37, %s38
      %p50 = scmp.eq.s32.totalorder %s21, 1
      %p51 = por %p49, %p50
      %p53 = scmp.ne.s32.totalorder %s38, %s52
      %p54 = scmp.eq.s32.totalorder %s21, 0
      %p55 = por %p53, %p54
      %s56 = ssub.s32 %s22, %s34
      %s57 = ssub.s32 %s23, %s30
      %s58 = sor.u32 %s56, %s57
      %p59 = scmp.eq.s32.totalorder %s58, 0
      %s61 = sadd.s32 %s60, 1
      %s62 = scalar_select %p59, %s60, %s61
      %p65 = pneg %p59
      %p66 = scmp.eq.s32.totalorder %s15, 1
      %p67 = por %p65, %p66
      %p68 = scmp.ne.s32.totalorder %s60, %s63
      %p69 = scmp.eq.s32.totalorder %s15, 0
      %p70 = por %p68, %p69
      %p71 = scmp.ne.s32.totalorder %s60, %s63
      %p72 = scmp.eq.s32.totalorder %s20, 1
      %p73 = por %p71, %p72
      %p74 = scmp.ne.s32.totalorder %s63, %s64
      %p75 = scmp.eq.s32.totalorder %s20, 0
      %p76 = por %p74, %p75
      %p77 = scmp.ne.s32.totalorder %s63, %s64
      %p78 = scmp.eq.s32.totalorder %s21, 1
      %p79 = por %p77, %p78
      %p81 = scmp.ne.s32.totalorder %s64, %s80
      %p82 = scmp.eq.s32.totalorder %s21, 0
      %p83 = por %p81, %p82
      %s84 = ssub.s32 %s22, %s34
      %s85 = ssub.s32 %s23, %s30
      %s86 = sor.u32 %s84, %s85
      %p87 = scmp.eq.s32.totalorder %s86, 0
      %s89 = sadd.s32 %s88, 1
      %s90 = scalar_select %p87, %s88, %s89
      %p93 = pneg %p87
      %p94 = scmp.eq.s32.totalorder %s15, 1
      %p95 = por %p93, %p94
      %p96 = scmp.ne.s32.totalorder %s88, %s91
      %p97 = scmp.eq.s32.totalorder %s15, 0
      %p98 = por %p96, %p97
      %p99 = scmp.ne.s32.totalorder %s88, %s91
      %p100 = scmp.eq.s32.totalorder %s20, 1
      %p101 = por %p99, %p100
      %p102 = scmp.ne.s32.totalorder %s91, %s92
      %p103 = scmp.eq.s32.totalorder %s20, 0
      %p104 = por %p102, %p103
      %p105 = scmp.ne.s32.totalorder %s91, %s92
      %p106 = scmp.eq.s32.totalorder %s21, 1
      %p107 = por %p105, %p106
      %p109 = scmp.ne.s32.totalorder %s92, %s108
      %p110 = scmp.eq.s32.totalorder %s21, 0
      %p111 = por %p109, %p110
      %p112 = scmp.le.s32.totalorder 1, %s15
      %p113 = scmp.lt.s32.totalorder %s15, 3
      %p114 = pnand %p112, %p113
      %p115 = pneg %p114
      // Predicated region
      $region9: #{tpu_custom_call.1} parent=5 // pred_check
        _
      $region10: #{tpu_custom_call.1} parent=5 // pred_check_branch
        %117 = sbr.rel (%p114) target = $region12
      $region11: #{tpu_custom_call.1} parent=5 // pred_region
        %s118 = ssub.s32 %s15, 1
        // Predicated region
        $region13: #{tpu_custom_call.1} parent=11 // pred_check
          %p119 = pneg %p48
        $region14: #{tpu_custom_call.1} parent=11 // pred_check_branch
          %121 = sbr.rel (%p119) target = $region16
        $region15: #{tpu_custom_call.1} parent=11 // pred_region
          %s123 = ssub.s32 128, 128
          %124 = vsyncadd [#allocation3], %s123
          %s126 = sshll.u32 [#allocation2], 4
          %s127 = int_to_ptr.vmem [resolvable:$true] %s126
          %129 = dma.hbm_to_vmem [thread:$0]  %s0, 128, %s127, [#allocation3]
        $region16: #{tpu_custom_call.1} parent=11 // pred_fallthru
          _
      $region12: #{tpu_custom_call.1} parent=5 // pred_fallthru
        _
      %p130 = scmp.lt.s32.totalorder %s15, 2
      // Predicated region
      $region17: #{tpu_custom_call.1} parent=5 // pred_check
        %p131 = pneg %p130
      $region18: #{tpu_custom_call.1} parent=5 // pred_check_branch
        %133 = sbr.rel (%p131) target = $region20
      $region19: #{tpu_custom_call.1} parent=5 // pred_region
        // Predicated region
        $region21: #{tpu_custom_call.1} parent=19 // pred_check
          %p134 = pneg %p70
        $region22: #{tpu_custom_call.1} parent=19 // pred_check_branch
          %136 = sbr.rel (%p134) target = $region24
        $region23: #{tpu_custom_call.1} parent=19 // pred_region
          %s137 = sand.u32 %s60, 1
          %s138 = scalar_lea.sflag [#allocation6], %s137
          %s139 = sand.u32 %s60, 1
          %s140 = smul.addr %s139, 80
          %s141 = scalar_lea.vmem [#allocation5], %s140
          %s142 = smul.u32 2, %s23
          %s144 = ssub.s32 1280, 1280
          %145 = vsyncadd %s138, %s144
          %s146 = smul.addr %s22, 10
          %s147 = sadd.s32 %s142, %s146
          %s148 = smul.addr %s147, 128
          %s149 = scalar_lea.hbm %s1, %s148
          %s150 = sshll.u32 %s141, 4
          %s151 = int_to_ptr.vmem [resolvable:$true] %s150
          %156 = dma.hbm_to_vmem [thread:$0]  %s149, 1280, %s151, %s138, 256, 256, 16
        $region24: #{tpu_custom_call.1} parent=19 // pred_fallthru
          _
      $region20: #{tpu_custom_call.1} parent=5 // pred_fallthru
        _
      %p157 = scmp.le.s32.totalorder 1, %s15
      %p158 = scmp.lt.s32.totalorder %s15, 3
      %p159 = pnand %p157, %p158
      %p160 = pneg %p159
      // Predicated region
      $region25: #{tpu_custom_call.1} parent=5 // pred_check
        _
      $region26: #{tpu_custom_call.1} parent=5 // pred_check_branch
        %162 = sbr.rel (%p159) target = $region28
      $region27: #{tpu_custom_call.1} parent=5 // pred_region
        %s163 = ssub.s32 %s15, 1
        // Predicated region
        $region29: #{tpu_custom_call.1} parent=27 // pred_check
          %p164 = pneg %p48
        $region30: #{tpu_custom_call.1} parent=27 // pred_check_branch
          %166 = sbr.rel (%p164) target = $region32
        $region31: #{tpu_custom_call.1} parent=27 // pred_region
          %167 = dma.done [#allocation3], 128
        $region32: #{tpu_custom_call.1} parent=27 // pred_fallthru
          _
        %s168 = sand.u32 %s63, 1
        %s169 = scalar_lea.sflag [#allocation6], %s168
        %s170 = sand.u32 %s63, 1
        %s171 = smul.addr %s170, 80
        %s172 = scalar_lea.vmem [#allocation5], %s171
        // Predicated region
        $region33: #{tpu_custom_call.1} parent=27 // pred_check
          %p173 = pneg %p76
        $region34: #{tpu_custom_call.1} parent=27 // pred_check_branch
          %175 = sbr.rel (%p173) target = $region36
        $region35: #{tpu_custom_call.1} parent=27 // pred_region
          %176 = dma.done %s169, 1280
        $region36: #{tpu_custom_call.1} parent=27 // pred_fallthru
          _
        %p177 = pneg %p48
        %p178 = pneg %p45
        %s179 = sand.u32 %s63, 1
        %s180 = scalar_lea.sflag [#allocation6], %s179
        %s181 = sand.u32 %s63, 1
        %s182 = smul.addr %s181, 80
        %s183 = scalar_lea.vmem [#allocation5], %s182
        %p184 = pneg %p76
        %p185 = pneg %p73
        %p186 = pneg %p104
        %p187 = pneg %p101
        %s188 = sand.u32 %s91, 1
        %s189 = scalar_lea.sflag [#allocation4], %s188
        %s190 = sand.u32 %s91, 1
        %s191 = smul.addr %s190, 16
        %s192 = scalar_lea.vmem [#allocation7], %s191
        %s193 = smul.u32 2, %s25
        %s194 = smul.u32 2, %s25
        %v195 = vld [vmem:[#allocation2] sm:$0xff]
        %v196 = vld [vmem:[%s172] sm:$0xff]
        %v197 = vld [vmem:[%s172 + $0x8] sm:$0xff]
        %v198 = vld [vmem:[%s172 + $0x10] sm:$0xff]
        %v199 = vld [vmem:[%s172 + $0x18] sm:$0xff]
        %v200 = vld [vmem:[%s172 + $0x20] sm:$0xff]
        %v201 = vld [vmem:[%s172 + $0x28] sm:$0xff]
        %v202 = vld [vmem:[%s172 + $0x30] sm:$0xff]
        %v203 = vld [vmem:[%s172 + $0x38] sm:$0xff]
        %v204 = vld [vmem:[%s172 + $0x40] sm:$0xff]
        %v205 = vld [vmem:[%s172 + $0x48] sm:$0xff]
        %vm206 = vcmask 326656
        %v208 = vsel %vm206, %v195, 0
        %210 = vmatprep.subr.mxu0 0.0
        %211 = vmatpush1.msra.mxu0 0.0
        %212 = vmatprep.subr.mxu0 0.0
        %213 = vmatpush1.msra.mxu0 0.0
        %214 = vmatprep.subr.mxu0 0.0
        %215 = vmatpush1.msra.mxu0 0.0
        %216 = vmatprep.subr.mxu0 0.0
        %217 = vmatpush1.msra.mxu0 0.0
        %218 = vmatprep.subr.mxu0 0.0
        %219 = vmatpush1.msra.mxu0 0.0
        %220 = vmatprep.subr.mxu0 0.0
        %221 = vmatpush1.msra.mxu0 0.0
        %222 = vmatprep.subr.mxu0 0.0
        %223 = vmatpush1.msra.mxu0 0.0
        %224 = vmatprep.subr.mxu0 0.0
        %225 = vmatpush1.msra.mxu0 0.0
        %226 = vmatprep.subr.mxu0 0.0
        %227 = vmatpush1.msra.mxu0 0.0
        %228 = vmatprep.subr.mxu0 0.0
        %229 = vmatpush1.msra.mxu0 0.0
        %230 = vmatprep.subr.mxu0 0.0
        %231 = vmatpush1.msra.mxu0 0.0
        %232 = vmatprep.subr.mxu0 %v205
        %233 = vmatpush1.msra.mxu0 %v204
        %234 = vmatprep.subr.mxu0 %v203
        %235 = vmatpush1.msra.mxu0 %v202
        %236 = vmatprep.subr.mxu0 %v201
        %237 = vmatpush1.msra.mxu0 %v200
        %238 = vmatprep.subr.mxu0 %v199
        %239 = vmatpush1.msra.mxu0 %v198
        %240 = vmatprep.subr.mxu0 %v197
        %241 = vmatpush1.msra.mxu0 %v196
        %242 = vmatprep.subr.mxu0 0.0
        %243 = vmatpush2.msra.mxu0 0.0
        %244 = vmatprep.subr.mxu0 0.0
        %245 = vmatpush2.msra.mxu0 0.0
        %246 = vmatprep.subr.mxu0 0.0
        %247 = vmatpush2.msra.mxu0 0.0
        %248 = vmatprep.subr.mxu0 0.0
        %249 = vmatpush2.msra.mxu0 0.0
        %250 = vmatprep.subr.mxu0 0.0
        %251 = vmatpush2.msra.mxu0 0.0
        %252 = vmatprep.subr.mxu0 0.0
        %253 = vmatpush2.msra.mxu0 0.0
        %254 = vmatprep.subr.mxu0 0.0
        %255 = vmatpush2.msra.mxu0 0.0
        %256 = vmatprep.subr.mxu0 0.0
        %257 = vmatpush2.msra.mxu0 0.0
        %258 = vmatprep.subr.mxu0 0.0
        %259 = vmatpush2.msra.mxu0 0.0
        %260 = vmatprep.subr.mxu0 0.0
        %261 = vmatpush2.msra.mxu0 0.0
        %262 = vmatprep.subr.mxu0 0.0
        %263 = vmatpush2.msra.mxu0 0.0
        %264 = vmatprep.subr.mxu0 0.0
        %265 = vmatpush2.msra.mxu0 0.0
        %266 = vmatprep.subr.mxu0 0.0
        %267 = vmatpush2.msra.mxu0 0.0
        %268 = vmatprep.subr.mxu0 0.0
        %269 = vmatpush2.msra.mxu0 0.0
        %270 = vmatprep.subr.mxu0 0.0
        %271 = vmatpush2.msra.mxu0 0.0
        %272 = vmatprep.subr.mxu0 0.0
        %273 = vmatpush2.msra.mxu0 0.0
        %274 = vmatprep.mubr.f32.mxu0 0.0
        %275 = vmatmul.mubr.f32.gmra.mxu0 %v208
        %v276 = vpop.f32.mrf.mxu0
        %v277 = vadd.f32 0.0, %v276
        %v278 = vpop.f32.mrf.mxu0
        %v279 = vadd.f32 0.0, %v278
        %280 = vdwg.mxu0
        %281 = vst [vmem:[%s192] sm:$0xff] %v277
        %282 = vst [vmem:[%s192 + $0x8] sm:$0xff] %v279
        %s283 = sand.u32 %s91, 1
        %s284 = scalar_lea.sflag [#allocation4], %s283
        %s285 = sand.u32 %s91, 1
        %s286 = smul.addr %s285, 16
        %s287 = scalar_lea.vmem [#allocation7], %s286
        // Predicated region
        $region37: #{tpu_custom_call.1} parent=27 // pred_check
          %p288 = pneg %p101
        $region38: #{tpu_custom_call.1} parent=27 // pred_check_branch
          %290 = sbr.rel (%p288) target = $region40
        $region39: #{tpu_custom_call.1} parent=27 // pred_region
          %s291 = smul.u32 2, %s25
          %s293 = ssub.s32 256, 256
          %294 = vsyncadd %s284, %s293
          %s295 = smul.addr %s24, 2
          %s296 = sadd.s32 %s291, %s295
          %s297 = smul.addr %s296, 128
          %s298 = scalar_lea.hbm %s2, %s297
          %s300 = sshll.u32 %s287, 4
          %s301 = int_to_ptr.vmem [resolvable:$true] %s300
          %303 = dma.vmem_to_hbm [thread:$0]  %s301, 256, %s298, %s284
        $region40: #{tpu_custom_call.1} parent=27 // pred_fallthru
          _
      $region28: #{tpu_custom_call.1} parent=5 // pred_fallthru
        _
      %p304 = scmp.le.s32.totalorder 2, %s15
      // Predicated region
      $region41: #{tpu_custom_call.1} parent=5 // pred_check
        %p305 = pneg %p304
      $region42: #{tpu_custom_call.1} parent=5 // pred_check_branch
        %307 = sbr.rel (%p305) target = $region44
      $region43: #{tpu_custom_call.1} parent=5 // pred_region
        %s308 = ssub.s32 %s15, 2
        // Predicated region
        $region45: #{tpu_custom_call.1} parent=43 // pred_check
          %p309 = pneg %p107
        $region46: #{tpu_custom_call.1} parent=43 // pred_check_branch
          %311 = sbr.rel (%p309) target = $region48
        $region47: #{tpu_custom_call.1} parent=43 // pred_region
          %s312 = sand.u32 %s92, 1
          %s313 = scalar_lea.sflag [#allocation4], %s312
          %s314 = sand.u32 %s92, 1
          %s315 = smul.addr %s314, 16
          %s316 = scalar_lea.vmem [#allocation7], %s315
          %317 = dma.done %s313, 256
        $region48: #{tpu_custom_call.1} parent=43 // pred_fallthru
          _
      $region44: #{tpu_custom_call.1} parent=5 // pred_fallthru
        _
    $region6: #{tpu_custom_call.1} parent=1 // loop_footer
      %s19 = sadd.s32 1, %s15
    $region7: #{tpu_custom_call.1} parent=1 // loop_footer_branch
      %14 = sbr.rel target = $region3
    $region8: #{tpu_custom_call.1} parent=1 // loop_exit
      _
    %318 = vsyncpa [#allocation3], 1
    %s319 = scalar_lea.sflag [#allocation3], 1
    %320 = vsyncpa %s319, 1
    %321 = vsyncpa [#allocation6], 1
    %s322 = scalar_lea.sflag [#allocation6], 1
    %323 = vsyncpa %s322, 1
    %324 = vsyncpa [#allocation4], 1
    %s325 = scalar_lea.sflag [#allocation4], 1
    %326 = vsyncpa %s325, 1

</llo_original>
